<compile_context>
chip_gen: v7x
topology: tpu7x:2x2x1
jax: 0.10.0
libtpu: 0.0.40
codegen_flags: <defaults>
</compile_context>

<pallas_src>
import math
import functools

import jax
import jax.numpy as jnp
from jax.experimental import pallas as pl
from jax.experimental.pallas import tpu as pltpu

_LANES = 128
_TM_MAX = 1024     # rows of 128 boxes per grid step -> ~4.5 MiB of inputs/step
_NCORES = 2        # outer "parallel" axis; shards across TensorCores on v7x


def _round_up(x, k):
    return ((x + k - 1) // k) * k


def _iou_loss_kernel(*refs, loss_type, has_weight, n_boxes, tiles_per_core,
                     block_boxes):
    if has_weight:
        pred_ref, target_ref, weight_ref, loss_out, wloss_out, w_out = refs
    else:
        pred_ref, target_ref, loss_out = refs
        weight_ref = wloss_out = w_out = None

    c = pl.program_id(0)
    g = pl.program_id(1)

    @pl.when(g == 0)
    def _init():
        loss_out[...] = jnp.zeros_like(loss_out)
        if has_weight:
            wloss_out[...] = jnp.zeros_like(wloss_out)
            w_out[...] = jnp.zeros_like(w_out)

    # Dense (TM, 128) coordinate planes.
    px1 = pred_ref[0]
    py1 = pred_ref[1]
    px2 = pred_ref[2]
    py2 = pred_ref[3]
    tx1 = target_ref[0]
    ty1 = target_ref[1]
    tx2 = target_ref[2]
    ty2 = target_ref[3]

    # --- separate areas ---
    target_area = (tx2 - tx1) * (ty2 - ty1)
    pred_area = (px2 - px1) * (py2 - py1)

    # --- intersection / IoU ---
    w_inter = jnp.maximum(
        jnp.minimum(px2, tx2) - jnp.maximum(px1, tx1), 0.0)
    h_inter = jnp.maximum(
        jnp.minimum(py2, ty2) - jnp.maximum(py1, ty1), 0.0)
    area_intersect = w_inter * h_inter
    area_union = target_area + pred_area - area_intersect
    ious = (area_intersect + 1.0) / (area_union + 1.0)

    if loss_type == 'iou':
        losses = -jnp.log(ious)
    elif loss_type == 'linear_iou':
        losses = 1.0 - ious
    elif loss_type == 'giou':
        W_c = jnp.maximum(px2, tx2) - jnp.minimum(px1, tx1)
        H_c = jnp.maximum(py2, ty2) - jnp.minimum(py1, ty1)
        ac_union = W_c * H_c + 1e-07
        giou_term = (ac_union - area_union) / ac_union
        losses = 1.0 - (ious - giou_term)
    elif loss_type in ('diou', 'ciou'):
        # Faithful to the PyTorch source: target_center is (erroneously) set
        # equal to pred_center, so the squared-distance term d == 0
        # identically -> constant-folded instead of computed.
        diou_term = 0.0
        if loss_type == 'diou':
            losses = 1.0 - (ious - diou_term)
        else:
            # TODO(synk): jnp.arctan relies on Mosaic transcendental lowering;
            # the 'ciou' path is implemented but not exercised in __main__.
            v = (4.0 / math.pi ** 2) * jnp.square(
                jnp.arctan((tx2 - tx1) / (ty2 - ty1))
                - jnp.arctan((px2 - px1) / (py2 - py1)))
            alpha = v / (1.0 - ious + v)
            losses = 1.0 - (ious - (diou_term + alpha * v))
    else:
        raise NotImplementedError(loss_type)

    # Mask padded boxes (index >= n_boxes) out of the reduction.
    tm = losses.shape[0]
    tile_idx = c * tiles_per_core + g
    base = tile_idx * block_boxes
    row = jax.lax.broadcasted_iota(jnp.int32, (tm, _LANES), 0)
    lane = jax.lax.broadcasted_iota(jnp.int32, (tm, _LANES), 1)
    valid = (base + row * _LANES + lane) < n_boxes
    losses = jnp.where(valid, losses, 0.0)

    # Per-lane partial sums, accumulated in the resident (1, 1, 128) out block.
    loss_out[...] += jnp.sum(losses, axis=0, keepdims=True)[None]
    if has_weight:
        w = jnp.where(valid, weight_ref[...], 0.0)
        wloss_out[...] += jnp.sum(losses * w, axis=0, keepdims=True)[None]
        w_out[...] += jnp.sum(w, axis=0, keepdims=True)[None]


def iou_loss(pred, target, weight=None, loss_type='iou'):
    """pred, target: (N, 4) boxes (x1, y1, x2, y2). weight: optional (N,).

    Returns a scalar float32 matching IOULoss(loss_type).forward semantics.
    """
    n = pred.shape[0]
    has_weight = weight is not None

    # --- tiling choice ------------------------------------------------------
    m = _round_up(max(1, -(-n // _LANES)), 8)            # sublane-aligned rows
    tm = min(_TM_MAX, _round_up(-(-m // _NCORES), 8))    # rows per grid step
    tiles_per_core = -(-m // (tm * _NCORES))
    m_padded = tm * tiles_per_core * _NCORES
    padded_n = m_padded * _LANES
    block_boxes = tm * _LANES

    # --- re-layout to planar (4, M, 128) coordinate planes -------------------
    # TODO(synk): a producer emitting planar (4, N) boxes would save this extra
    # HBM transpose pass for very large N.
    pred_p = jnp.pad(jnp.asarray(pred, jnp.float32).T,
                     ((0, 0), (0, padded_n - n))).reshape(4, m_padded, _LANES)
    target_p = jnp.pad(jnp.asarray(target, jnp.float32).T,
                       ((0, 0), (0, padded_n - n))).reshape(4, m_padded, _LANES)

    box_spec = pl.BlockSpec((4, tm, _LANES),
                            lambda c, g: (0, c * tiles_per_core + g, 0))
    in_specs = [box_spec, box_spec]
    args = [pred_p, target_p]
    if has_weight:
        w_p = jnp.pad(jnp.asarray(weight, jnp.float32),
                      (0, padded_n - n)).reshape(m_padded, _LANES)
        in_specs.append(
            pl.BlockSpec((tm, _LANES),
                         lambda c, g: (c * tiles_per_core + g, 0)))
        args.append(w_p)

    part_shape = jax.ShapeDtypeStruct((_NCORES, 1, _LANES), jnp.float32)
    part_spec = pl.BlockSpec((1, 1, _LANES), lambda c, g: (c, 0, 0))
    if has_weight:
        out_shape = (part_shape, part_shape, part_shape)
        out_specs = (part_spec, part_spec, part_spec)
    else:
        out_shape = part_shape
        out_specs = part_spec

    kernel = functools.partial(
        _iou_loss_kernel, loss_type=loss_type, has_weight=has_weight,
        n_boxes=n, tiles_per_core=tiles_per_core, block_boxes=block_boxes)

    out = pl.pallas_call(
        kernel,
        out_shape=out_shape,
        grid=(_NCORES, tiles_per_core),
        in_specs=in_specs,
        out_specs=out_specs,
        compiler_params=pltpu.CompilerParams(
            dimension_semantics=("parallel", "arbitrary")),
    )(*args)

    if has_weight:
        loss_sum = jnp.sum(out[0])
        mean_loss = loss_sum / jnp.float32(n)
        wloss_sum = jnp.sum(out[1])
        w_sum = jnp.sum(out[2])
        return jnp.where(w_sum > 0.0, wloss_sum, mean_loss)
    return jnp.sum(out) / jnp.float32(n)


def _reference_iou_loss(pred, target, weight=None, loss_type='iou'):
    # Pure-JAX reference mirroring the PyTorch module, for verification.
    pred = jnp.asarray(pred, jnp.float32)
    target = jnp.asarray(target, jnp.float32)
    px1, py1, px2, py2 = (pred[:, i] for i in range(4))
    tx1, ty1, tx2, ty2 = (target[:, i] for i in range(4))
    pred_center = (pred[:, :2] + pred[:, 2:]) / 2
    target_center = (pred[:, :2] + pred[:, 2:]) / 2
    d = jnp.sum(jnp.square(pred_center - target_center))
    target_area = (tx2 - tx1) * (ty2 - ty1)
    pred_area = (px2 - px1) * (py2 - py1)
    w_inter = jnp.clip(jnp.minimum(px2, tx2) - jnp.maximum(px1, tx1), 0)
    h_inter = jnp.clip(jnp.minimum(py2, ty2) - jnp.maximum(py1, ty1), 0)
    area_intersect = w_inter * h_inter
    area_union = target_area + pred_area - area_intersect
    ious = (area_intersect + 1.0) / (area_union + 1.0)
    W_c = jnp.maximum(px2, tx2) - jnp.minimum(px1, tx1)
    H_c = jnp.maximum(py2, ty2) - jnp.minimum(py1, ty1)
    ac_union = W_c * H_c + 1e-07
    gious = ious - (ac_union - area_union) / ac_union
    diou_term = d / (W_c ** 2 + H_c ** 2)
    dious = ious - diou_term
    v = 4 / math.pi ** 2 * jnp.square(
        jnp.arctan((tx2 - tx1) / (ty2 - ty1))
        - jnp.arctan((px2 - px1) / (py2 - py1)))
    alpha = v / (1 - ious + v)
    cious = ious - (diou_term + alpha * v)
    if loss_type == 'iou':
        losses = -jnp.log(ious)
    elif loss_type == 'linear_iou':
        losses = 1 - ious
    elif loss_type == 'giou':
        losses = 1 - gious
    elif loss_type == 'diou':
        losses = 1 - dious
    elif loss_type == 'ciou':
        losses = 1 - cious
    else:
        raise NotImplementedError
    if weight is not None:
        weight = jnp.asarray(weight, jnp.float32)
        return jnp.where(weight.sum() > 0, (losses * weight).sum(), losses.mean())
    return losses.mean()


if __name__ == "__main__":
    key = jax.random.PRNGKey(0)
    k1, k2, k3, k4, k5 = jax.random.split(key, 5)

    N = 8  # number of boxes
    # Build valid (x1, y1, x2, y2) boxes: x2 > x1, y2 > y1.
    pred_xy = jax.random.uniform(k1, (N, 2), minval=0.0, maxval=10.0)
    pred_wh = jax.random.uniform(k2, (N, 2), minval=1.0, maxval=5.0)
    pred = jnp.concatenate([pred_xy, pred_xy + pred_wh], axis=1)

    targ_xy = jax.random.uniform(k3, (N, 2), minval=0.0, maxval=10.0)
    targ_wh = jax.random.uniform(k4, (N, 2), minval=1.0, maxval=5.0)
    target = jnp.concatenate([targ_xy, targ_xy + targ_wh], axis=1)

    weight = jax.random.uniform(k5, (N,), minval=0.0, maxval=1.0)

    checks = [
        ('iou', None),
        ('iou', weight),
        ('linear_iou', None),
        ('giou', weight),
        ('diou', None),
    ]
    for lt, w in checks:
        out = jax.block_until_ready(iou_loss(pred, target, weight=w, loss_type=lt))
        ref = _reference_iou_loss(pred, target, weight=w, loss_type=lt)
        assert jnp.allclose(out, ref, rtol=1e-5, atol=1e-5), (lt, out, ref)

    # weight.sum() == 0 -> falls back to the mean path.
    zero_w = jnp.zeros((N,), jnp.float32)
    out0 = jax.block_until_ready(iou_loss(pred, target, weight=zero_w))
    ref0 = _reference_iou_loss(pred, target, weight=zero_w)
    assert jnp.allclose(out0, ref0, rtol=1e-5, atol=1e-5), (out0, ref0)

    print("KERNEL_OK")
</pallas_src>

<mosaic_0001>
module attributes {stable_mosaic.version = 11 : i64} {
  func.func @_iou_loss_kernel(%arg0: i32, %arg1: i32, %arg2: memref<4x8x128xf32, #tpu.memory_space<vmem>>, %arg3: memref<4x8x128xf32, #tpu.memory_space<vmem>>, %arg4: memref<1x1x128xf32, #tpu.memory_space<vmem>>) attributes {dimension_semantics = [#tpu.dimension_semantics<parallel>, #tpu.dimension_semantics<arbitrary>], iteration_bounds = array<i64: 2, 1>, scalar_prefetch = 0 : i64, scratch_operands = 0 : i64, tpu.core_type = #tpu.core_type<tc>, window_params = [{transform_indices = @transform_0, window_bounds = array<i64: 4, 8, 128>}, {transform_indices = @transform_1, window_bounds = array<i64: 4, 8, 128>}, {transform_indices = @transform_2, window_bounds = array<i64: 1, 1, 128>}]} {
    %c0_i32 = arith.constant 0 : i32
    %0 = arith.cmpi eq, %arg1, %c0_i32 : i32
    %1 = arith.extui %0 : i1 to i32
    %c0_i32_0 = arith.constant 0 : i32
    %2 = arith.cmpi ne, %1, %c0_i32_0 : i32
    scf.if %2 {
      %cst_33 = arith.constant 0.000000e+00 : f32
      %66 = vector.broadcast %cst_33 : f32 to vector<1x1x128xf32>
      %c0_34 = arith.constant 0 : index
      %c0_35 = arith.constant 0 : index
      %c0_36 = arith.constant 0 : index
      %67 = vector.load %arg4[%c0_34, %c0_35, %c0_36] : memref<1x1x128xf32, #tpu.memory_space<vmem>>, vector<1x1x128xf32>
      tpu.vector_store %arg4[%c0_34, %c0_35, %c0_36], %66 {strides = array<i32>} : memref<1x1x128xf32, #tpu.memory_space<vmem>>, vector<1x1x128xf32>,
    } else {
    }
    %c0 = arith.constant 0 : index
    %c0_1 = arith.constant 0 : index
    %c0_2 = arith.constant 0 : index
    %3 = vector.load %arg2[%c0, %c0_1, %c0_2] : memref<4x8x128xf32, #tpu.memory_space<vmem>>, vector<1x8x128xf32>
    %4 = vector.shape_cast %3 : vector<1x8x128xf32> to vector<8x128xf32>
    %c1 = arith.constant 1 : index
    %c0_3 = arith.constant 0 : index
    %c0_4 = arith.constant 0 : index
    %5 = vector.load %arg2[%c1, %c0_3, %c0_4] : memref<4x8x128xf32, #tpu.memory_space<vmem>>, vector<1x8x128xf32>
    %6 = vector.shape_cast %5 : vector<1x8x128xf32> to vector<8x128xf32>
    %c2 = arith.constant 2 : index
    %c0_5 = arith.constant 0 : index
    %c0_6 = arith.constant 0 : index
    %7 = vector.load %arg2[%c2, %c0_5, %c0_6] : memref<4x8x128xf32, #tpu.memory_space<vmem>>, vector<1x8x128xf32>
    %8 = vector.shape_cast %7 : vector<1x8x128xf32> to vector<8x128xf32>
    %c3 = arith.constant 3 : index
    %c0_7 = arith.constant 0 : index
    %c0_8 = arith.constant 0 : index
    %9 = vector.load %arg2[%c3, %c0_7, %c0_8] : memref<4x8x128xf32, #tpu.memory_space<vmem>>, vector<1x8x128xf32>
    %10 = vector.shape_cast %9 : vector<1x8x128xf32> to vector<8x128xf32>
    %c0_9 = arith.constant 0 : index
    %c0_10 = arith.constant 0 : index
    %c0_11 = arith.constant 0 : index
    %11 = vector.load %arg3[%c0_9, %c0_10, %c0_11] : memref<4x8x128xf32, #tpu.memory_space<vmem>>, vector<1x8x128xf32>
    %12 = vector.shape_cast %11 : vector<1x8x128xf32> to vector<8x128xf32>
    %c1_12 = arith.constant 1 : index
    %c0_13 = arith.constant 0 : index
    %c0_14 = arith.constant 0 : index
    %13 = vector.load %arg3[%c1_12, %c0_13, %c0_14] : memref<4x8x128xf32, #tpu.memory_space<vmem>>, vector<1x8x128xf32>
    %14 = vector.shape_cast %13 : vector<1x8x128xf32> to vector<8x128xf32>
    %c2_15 = arith.constant 2 : index
    %c0_16 = arith.constant 0 : index
    %c0_17 = arith.constant 0 : index
    %15 = vector.load %arg3[%c2_15, %c0_16, %c0_17] : memref<4x8x128xf32, #tpu.memory_space<vmem>>, vector<1x8x128xf32>
    %16 = vector.shape_cast %15 : vector<1x8x128xf32> to vector<8x128xf32>
    %c3_18 = arith.constant 3 : index
    %c0_19 = arith.constant 0 : index
    %c0_20 = arith.constant 0 : index
    %17 = vector.load %arg3[%c3_18, %c0_19, %c0_20] : memref<4x8x128xf32, #tpu.memory_space<vmem>>, vector<1x8x128xf32>
    %18 = vector.shape_cast %17 : vector<1x8x128xf32> to vector<8x128xf32>
    %19 = arith.subf %16, %12 : vector<8x128xf32>
    %20 = arith.subf %18, %14 : vector<8x128xf32>
    %21 = arith.mulf %19, %20 : vector<8x128xf32>
    %22 = arith.subf %8, %4 : vector<8x128xf32>
    %23 = arith.subf %10, %6 : vector<8x128xf32>
    %24 = arith.mulf %22, %23 : vector<8x128xf32>
    %25 = arith.minimumf %8, %16 : vector<8x128xf32>
    %26 = arith.maximumf %4, %12 : vector<8x128xf32>
    %27 = arith.subf %25, %26 : vector<8x128xf32>
    %cst = arith.constant 0.000000e+00 : f32
    %28 = vector.broadcast %cst : f32 to vector<8x128xf32>
    %29 = arith.maximumf %27, %28 : vector<8x128xf32>
    %30 = arith.minimumf %10, %18 : vector<8x128xf32>
    %31 = arith.maximumf %6, %14 : vector<8x128xf32>
    %32 = arith.subf %30, %31 : vector<8x128xf32>
    %cst_21 = arith.constant 0.000000e+00 : f32
    %33 = vector.broadcast %cst_21 : f32 to vector<8x128xf32>
    %34 = arith.maximumf %32, %33 : vector<8x128xf32>
    %35 = arith.mulf %29, %34 : vector<8x128xf32>
    %36 = arith.addf %21, %24 : vector<8x128xf32>
    %37 = arith.subf %36, %35 : vector<8x128xf32>
    %cst_22 = arith.constant 1.000000e+00 : f32
    %38 = vector.broadcast %cst_22 : f32 to vector<8x128xf32>
    %39 = arith.addf %35, %38 : vector<8x128xf32>
    %cst_23 = arith.constant 1.000000e+00 : f32
    %40 = vector.broadcast %cst_23 : f32 to vector<8x128xf32>
    %41 = arith.addf %37, %40 : vector<8x128xf32>
    %42 = arith.divf %39, %41 : vector<8x128xf32>
    %43 = math.log %42 : vector<8x128xf32>
    %cst_24 = arith.constant 0.000000e+00 : f32
    %44 = vector.broadcast %cst_24 : f32 to vector<8x128xf32>
    %45 = arith.subf %44, %43 : vector<8x128xf32>
    %c1_i32 = arith.constant 1 : i32
    %46 = arith.muli %arg0, %c1_i32 : i32
    %47 = arith.addi %46, %arg1 : i32
    %c1024_i32 = arith.constant 1024 : i32
    %48 = arith.muli %47, %c1024_i32 : i32
    %49 = tpu.iota {dimensions = array<i32: 0>} : vector<8x128xi32>
    %50 = tpu.iota {dimensions = array<i32: 1>} : vector<8x128xi32>
    %c128_i32 = arith.constant 128 : i32
    %51 = vector.broadcast %c128_i32 : i32 to vector<8x128xi32>
    %52 = arith.muli %49, %51 : vector<8x128xi32>
    %53 = vector.broadcast %48 : i32 to vector<8x128xi32>
    %54 = arith.addi %53, %52 : vector<8x128xi32>
    %55 = arith.addi %54, %50 : vector<8x128xi32>
    %c8_i32 = arith.constant 8 : i32
    %56 = vector.broadcast %c8_i32 : i32 to vector<8x128xi32>
    %57 = arith.cmpi slt, %55, %56 : vector<8x128xi32>
    %cst_25 = arith.constant 0.000000e+00 : f32
    %58 = vector.broadcast %cst_25 : f32 to vector<8x128xf32>
    %59 = arith.select %57, %45, %58 : vector<8x128xi1>, vector<8x128xf32>
    %c0_26 = arith.constant 0 : index
    %c0_27 = arith.constant 0 : index
    %c0_28 = arith.constant 0 : index
    %60 = vector.load %arg4[%c0_26, %c0_27, %c0_28] : memref<1x1x128xf32, #tpu.memory_space<vmem>>, vector<1x1x128xf32>
    %cst_29 = arith.constant dense<0.000000e+00> : vector<128xf32>
    %61 = vector.multi_reduction <add>, %59, %cst_29 [0] : vector<8x128xf32> to vector<128xf32>
    %62 = vector.shape_cast %61 : vector<128xf32> to vector<1x128xf32>
    %63 = vector.shape_cast %62 : vector<1x128xf32> to vector<1x1x128xf32>
    %64 = arith.addf %60, %63 : vector<1x1x128xf32>
    %c0_30 = arith.constant 0 : index
    %c0_31 = arith.constant 0 : index
    %c0_32 = arith.constant 0 : index
    %65 = vector.load %arg4[%c0_30, %c0_31, %c0_32] : memref<1x1x128xf32, #tpu.memory_space<vmem>>, vector<1x1x128xf32>
    tpu.vector_store %arg4[%c0_30, %c0_31, %c0_32], %64 {strides = array<i32>} : memref<1x1x128xf32, #tpu.memory_space<vmem>>, vector<1x1x128xf32>,
    return
  }
  func.func @transform_0(%arg0: i32, %arg1: i32) -> (i32, i32, i32) {
    %c1_i32 = arith.constant 1 : i32
    %0 = arith.muli %arg0, %c1_i32 : i32
    %1 = arith.addi %0, %arg1 : i32
    %c0_i32 = arith.constant 0 : i32
    %c0_i32_0 = arith.constant 0 : i32
    %c0_i32_1 = arith.constant 0 : i32
    return %c0_i32, %1, %c0_i32_0 : i32, i32, i32
  }
  func.func @transform_1(%arg0: i32, %arg1: i32) -> (i32, i32, i32) {
    %c1_i32 = arith.constant 1 : i32
    %0 = arith.muli %arg0, %c1_i32 : i32
    %1 = arith.addi %0, %arg1 : i32
    %c0_i32 = arith.constant 0 : i32
    %c0_i32_0 = arith.constant 0 : i32
    %c0_i32_1 = arith.constant 0 : i32
    return %c0_i32, %1, %c0_i32_0 : i32, i32, i32
  }
  func.func @transform_2(%arg0: i32, %arg1: i32) -> (i32, i32, i32) {
    %c0_i32 = arith.constant 0 : i32
    %c0_i32_0 = arith.constant 0 : i32
    %c0_i32_1 = arith.constant 0 : i32
    return %arg0, %c0_i32, %c0_i32_0 : i32, i32, i32
  }
}

</mosaic_0001>

<llo_original>
// kernel: tpu_custom_call.1
$region0: #{tpu_custom_call.1}
  #allocation0 [shape = 'u32[]', space=smem, size = 0x4, offset = 0x4, fixed_abs, tag = 'smem constant byte address 0x4 - core index']
  #allocation1 [shape = 'u32[144,128]{1,0:T(1,128)}', space=vmem, size = 0x12000, scoped, tag = 'internal scratch']
  %s0 = inlined_call_operand.hbm [shape: f32[4,16,128], index: 0, kind: input, shape index: {}]
  %s1 = inlined_call_operand.hbm [shape: f32[4,16,128], index: 1, kind: input, shape index: {}]
  %s2 = inlined_call_operand.hbm [shape: f32[2,1,128], index: 2, kind: output, shape index: {}]
  %s3 = sld [smem:[#allocation0]]
  $region53: #{tpu_custom_call.1} parent=0
    _
  %s5 = ssub.s32 1, %s3
  %s6 = scalar_select 0, %s5, %s3
  $region1: #{tpu_custom_call.1} parent=0
    #allocation2 [shape = 'u8[32768]{0}', space=vmem, size = 0x8000, scoped, tag = 'input window, operand 0']
    #allocation3 [shape = 's32[2]{0}', space=sflag, size = 0x8, scoped, tag = 'scoped memory for tpu_custom_call.1']
    #allocation4 [shape = 's32[2]{0}', space=sflag, size = 0x8, scoped, tag = 'scoped memory for tpu_custom_call.1']
    #allocation5 [shape = 'u8[32768]{0}', space=vmem, size = 0x8000, scoped, tag = 'input window, operand 1']
    #allocation6 [shape = 's32[2]{0}', space=sflag, size = 0x8, scoped, tag = 'scoped memory for tpu_custom_call.1']
    #allocation7 [shape = 'u8[1024]{0}', space=vmem, size = 0x400, scoped, tag = 'output window, operand 0']
    %7 = vsyncpa [#allocation3], 0
    %s8 = scalar_lea.sflag [#allocation3], 1
    %9 = vsyncpa %s8, 0
    %10 = vsyncpa [#allocation6], 0
    %s11 = scalar_lea.sflag [#allocation6], 1
    %12 = vsyncpa %s11, 0
    %13 = vsyncpa [#allocation4], 0
    %s14 = scalar_lea.sflag [#allocation4], 1
    %15 = vsyncpa %s14, 0
    loop: start=0, step=1, limit=4
    $region2: #{tpu_custom_call.1} parent=1 // loop_pre_header
      _
    $region3: #{tpu_custom_call.1} parent=1 // loop_header
      %s17 = sphi 0, %s21
      %p18 = scmp.ge.s32.totalorder %s17, 4
      %s24 = sphi 0, %s36
      %s25 = sphi 0, %s32
      %s26 = sphi 0, %s24
      %s27 = sphi 0, %s25
      %s28 = sphi 0, %s26
      %s29 = sphi 0, %s27
      %s41 = sphi 0, %s43
      %s44 = sphi 0, %s41
      %s45 = sphi 0, %s44
      %s61 = sphi 0, %s45
      %s69 = sphi 0, %s71
      %s72 = sphi 0, %s69
      %s73 = sphi 0, %s72
      %s89 = sphi 0, %s73
      %s95 = sphi 0, %s97
      %s98 = sphi 0, %s95
      %s99 = sphi 0, %s98
      %s115 = sphi 0, %s99
    $region4: #{tpu_custom_call.1} parent=1 // loop_header_branch
      %20 = sbr.rel (%p18) target = $region8
    $region5: #{tpu_custom_call.1} parent=1 // loop_body
      %s22 = ssub.s32 %s17, 1
      %s23 = ssub.s32 %s17, 2
      %s30 = sadd.s32 1, %s25
      %p31 = scmp.ge.s32.totalorder %s30, 1
      %s32 = scalar_select %p31, 0, %s30
      %s33 = sadd.s32 1, %s24
      %s34 = scalar_select %p31, %s33, %s24
      %p35 = scmp.ge.s32.totalorder %s34, 2
      %s36 = scalar_select %p35, 0, %s34
      %s37 = sadd.s32 %s24, %s25
      %s38 = sadd.s32 %s36, %s32
      %s39 = ssub.s32 %s37, %s38
      %p40 = scmp.eq.s32.totalorder %s39, 0
      %s42 = sadd.s32 %s41, 1
      %s43 = scalar_select %p40, %s41, %s42
      %p46 = pneg %p40
      %p47 = scmp.eq.s32.totalorder %s17, 1
      %p48 = por %p46, %p47
      %p49 = scmp.ne.s32.totalorder %s41, %s44
      %p50 = scmp.eq.s32.totalorder %s17, 0
      %p51 = por %p49, %p50
      %p52 = scmp.ne.s32.totalorder %s41, %s44
      %p53 = scmp.eq.s32.totalorder %s22, 1
      %p54 = por %p52, %p53
      %p55 = scmp.ne.s32.totalorder %s44, %s45
      %p56 = scmp.eq.s32.totalorder %s22, 0
      %p57 = por %p55, %p56
      %p58 = scmp.ne.s32.totalorder %s44, %s45
      %p59 = scmp.eq.s32.totalorder %s23, 1
      %p60 = por %p58, %p59
      %p62 = scmp.ne.s32.totalorder %s45, %s61
      %p63 = scmp.eq.s32.totalorder %s23, 0
      %p64 = por %p62, %p63
      %s65 = sadd.s32 %s24, %s25
      %s66 = sadd.s32 %s36, %s32
      %s67 = ssub.s32 %s65, %s66
      %p68 = scmp.eq.s32.totalorder %s67, 0
      %s70 = sadd.s32 %s69, 1
      %s71 = scalar_select %p68, %s69, %s70
      %p74 = pneg %p68
      %p75 = scmp.eq.s32.totalorder %s17, 1
      %p76 = por %p74, %p75
      %p77 = scmp.ne.s32.totalorder %s69, %s72
      %p78 = scmp.eq.s32.totalorder %s17, 0
      %p79 = por %p77, %p78
      %p80 = scmp.ne.s32.totalorder %s69, %s72
      %p81 = scmp.eq.s32.totalorder %s22, 1
      %p82 = por %p80, %p81
      %p83 = scmp.ne.s32.totalorder %s72, %s73
      %p84 = scmp.eq.s32.totalorder %s22, 0
      %p85 = por %p83, %p84
      %p86 = scmp.ne.s32.totalorder %s72, %s73
      %p87 = scmp.eq.s32.totalorder %s23, 1
      %p88 = por %p86, %p87
      %p90 = scmp.ne.s32.totalorder %s73, %s89
      %p91 = scmp.eq.s32.totalorder %s23, 0
      %p92 = por %p90, %p91
      %s93 = ssub.s32 %s24, %s36
      %p94 = scmp.eq.s32.totalorder %s93, 0
      %s96 = sadd.s32 %s95, 1
      %s97 = scalar_select %p94, %s95, %s96
      %p100 = pneg %p94
      %p101 = scmp.eq.s32.totalorder %s17, 1
      %p102 = por %p100, %p101
      %p103 = scmp.ne.s32.totalorder %s95, %s98
      %p104 = scmp.eq.s32.totalorder %s17, 0
      %p105 = por %p103, %p104
      %p106 = scmp.ne.s32.totalorder %s95, %s98
      %p107 = scmp.eq.s32.totalorder %s22, 1
      %p108 = por %p106, %p107
      %p109 = scmp.ne.s32.totalorder %s98, %s99
      %p110 = scmp.eq.s32.totalorder %s22, 0
      %p111 = por %p109, %p110
      %p112 = scmp.ne.s32.totalorder %s98, %s99
      %p113 = scmp.eq.s32.totalorder %s23, 1
      %p114 = por %p112, %p113
      %p116 = scmp.ne.s32.totalorder %s99, %s115
      %p117 = scmp.eq.s32.totalorder %s23, 0
      %p118 = por %p116, %p117
      %p119 = scmp.le.s32.totalorder 1, %s17
      %p120 = scmp.lt.s32.totalorder %s17, 3
      %p121 = pnand %p119, %p120
      %p122 = pneg %p121
      // Predicated region
      $region9: #{tpu_custom_call.1} parent=5 // pred_check
        _
      $region10: #{tpu_custom_call.1} parent=5 // pred_check_branch
        %124 = sbr.rel (%p121) target = $region12
      $region11: #{tpu_custom_call.1} parent=5 // pred_region
        %s125 = ssub.s32 %s17, 1
      $region12: #{tpu_custom_call.1} parent=5 // pred_fallthru
        _
      %p126 = scmp.lt.s32.totalorder %s17, 2
      // Predicated region
      $region13: #{tpu_custom_call.1} parent=5 // pred_check
        %p127 = pneg %p126
      $region14: #{tpu_custom_call.1} parent=5 // pred_check_branch
        %129 = sbr.rel (%p127) target = $region16
      $region15: #{tpu_custom_call.1} parent=5 // pred_region
        // Predicated region
        $region17: #{tpu_custom_call.1} parent=15 // pred_check
          %p130 = pneg %p51
        $region18: #{tpu_custom_call.1} parent=15 // pred_check_branch
          %132 = sbr.rel (%p130) target = $region20
        $region19: #{tpu_custom_call.1} parent=15 // pred_region
          %s133 = sand.u32 %s41, 1
          %s134 = scalar_lea.sflag [#allocation3], %s133
          %s135 = sand.u32 %s41, 1
          %s136 = smul.addr %s135, 32
          %s137 = scalar_lea.vmem [#allocation2], %s136
          %s138 = sadd.s32 %s24, %s25
          %s140 = ssub.s32 512, 512
          %141 = vsyncadd %s134, %s140
          %s142 = smul.addr %s138, 128
          %s143 = scalar_lea.hbm %s0, %s142
          %s144 = sshll.u32 %s137, 4
          %s145 = int_to_ptr.vmem [resolvable:$true] %s144
          %150 = dma.hbm_to_vmem [thread:$0]  %s143, 512, %s145, %s134, 256, 128, 8
        $region20: #{tpu_custom_call.1} parent=15 // pred_fallthru
          _
        // Predicated region
        $region21: #{tpu_custom_call.1} parent=15 // pred_check
          %p151 = pneg %p79
        $region22: #{tpu_custom_call.1} parent=15 // pred_check_branch
          %153 = sbr.rel (%p151) target = $region24
        $region23: #{tpu_custom_call.1} parent=15 // pred_region
          %s154 = sand.u32 %s69, 1
          %s155 = scalar_lea.sflag [#allocation6], %s154
          %s156 = sand.u32 %s69, 1
          %s157 = smul.addr %s156, 32
          %s158 = scalar_lea.vmem [#allocation5], %s157
          %s159 = sadd.s32 %s24, %s25
          %s161 = ssub.s32 512, 512
          %162 = vsyncadd %s155, %s161
          %s163 = smul.addr %s159, 128
          %s164 = scalar_lea.hbm %s1, %s163
          %s165 = sshll.u32 %s158, 4
          %s166 = int_to_ptr.vmem [resolvable:$true] %s165
          %171 = dma.hbm_to_vmem [thread:$0]  %s164, 512, %s166, %s155, 256, 128, 8
        $region24: #{tpu_custom_call.1} parent=15 // pred_fallthru
          _
      $region16: #{tpu_custom_call.1} parent=5 // pred_fallthru
        _
      %p172 = scmp.le.s32.totalorder 1, %s17
      %p173 = scmp.lt.s32.totalorder %s17, 3
      %p174 = pnand %p172, %p173
      %p175 = pneg %p174
      // Predicated region
      $region25: #{tpu_custom_call.1} parent=5 // pred_check
        _
      $region26: #{tpu_custom_call.1} parent=5 // pred_check_branch
        %177 = sbr.rel (%p174) target = $region28
      $region27: #{tpu_custom_call.1} parent=5 // pred_region
        %s178 = ssub.s32 %s17, 1
        %s179 = sand.u32 %s44, 1
        %s180 = scalar_lea.sflag [#allocation3], %s179
        %s181 = sand.u32 %s44, 1
        %s182 = smul.addr %s181, 32
        %s183 = scalar_lea.vmem [#allocation2], %s182
        // Predicated region
        $region29: #{tpu_custom_call.1} parent=27 // pred_check
          %p184 = pneg %p57
        $region30: #{tpu_custom_call.1} parent=27 // pred_check_branch
          %186 = sbr.rel (%p184) target = $region32
        $region31: #{tpu_custom_call.1} parent=27 // pred_region
          %187 = dma.done %s180, 512
        $region32: #{tpu_custom_call.1} parent=27 // pred_fallthru
          _
        %s188 = sand.u32 %s72, 1
        %s189 = scalar_lea.sflag [#allocation6], %s188
        %s190 = sand.u32 %s72, 1
        %s191 = smul.addr %s190, 32
        %s192 = scalar_lea.vmem [#allocation5], %s191
        // Predicated region
        $region33: #{tpu_custom_call.1} parent=27 // pred_check
          %p193 = pneg %p85
        $region34: #{tpu_custom_call.1} parent=27 // pred_check_branch
          %195 = sbr.rel (%p193) target = $region36
        $region35: #{tpu_custom_call.1} parent=27 // pred_region
          %196 = dma.done %s189, 512
        $region36: #{tpu_custom_call.1} parent=27 // pred_fallthru
          _
        %s197 = sand.u32 %s44, 1
        %s198 = scalar_lea.sflag [#allocation3], %s197
        %s199 = sand.u32 %s44, 1
        %s200 = smul.addr %s199, 32
        %s201 = scalar_lea.vmem [#allocation2], %s200
        %p202 = pneg %p57
        %p203 = pneg %p54
        %s204 = sand.u32 %s72, 1
        %s205 = scalar_lea.sflag [#allocation6], %s204
        %s206 = sand.u32 %s72, 1
        %s207 = smul.addr %s206, 32
        %s208 = scalar_lea.vmem [#allocation5], %s207
        %p209 = pneg %p85
        %p210 = pneg %p82
        %p211 = pneg %p111
        %p212 = pneg %p108
        %s213 = sand.u32 %s98, 1
        %s214 = scalar_lea.sflag [#allocation4], %s213
        %s215 = sand.u32 %s98, 1
        %s216 = scalar_lea.vmem [#allocation7], %s215
        %s217 = sadd.s32 %s26, %s27
        %s218 = sadd.s32 %s26, %s27
        %p219 = scmp.eq.s32.totalorder %s27, 0
        // Predicated region
        $region37: #{tpu_custom_call.1} parent=27 // pred_check
          %p220 = pneg %p219
        $region38: #{tpu_custom_call.1} parent=27 // pred_check_branch
          %222 = sbr.rel (%p220) target = $region40
        $region39: #{tpu_custom_call.1} parent=27 // pred_region
          %223 = vst [vmem:[%s216] sm:$0x1] 0.0
        $region40: #{tpu_custom_call.1} parent=27 // pred_fallthru
          _
        %v224 = vld [vmem:[%s183] sm:$0xff]
        %s225 = scalar_lea.vmem %s183, 8 [#allocation2]
        %v226 = vld [vmem:[%s225] sm:$0xff]
        %s227 = scalar_lea.vmem %s183, 16 [#allocation2]
        %v228 = vld [vmem:[%s227] sm:$0xff]
        %s229 = scalar_lea.vmem %s183, 24 [#allocation2]
        %v230 = vld [vmem:[%s229] sm:$0xff]
        %v231 = vld [vmem:[%s192] sm:$0xff]
        %s232 = scalar_lea.vmem %s192, 8 [#allocation5]
        %v233 = vld [vmem:[%s232] sm:$0xff]
        %s234 = scalar_lea.vmem %s192, 16 [#allocation5]
        %v235 = vld [vmem:[%s234] sm:$0xff]
        %s236 = scalar_lea.vmem %s192, 24 [#allocation5]
        %v237 = vld [vmem:[%s236] sm:$0xff]
        %v238 = vsub.f32 %v235, %v231
        %v239 = vsub.f32 %v237, %v233
        %v240 = vmul.f32 %v238, %v239
        %v241 = vsub.f32 %v228, %v224
        %v242 = vsub.f32 %v230, %v226
        %v243 = vmul.f32 %v241, %v242
        %v244 = vmin.f32 %v228, %v235
        %v245 = vmax.f32 %v224, %v231
        %v246 = vsub.f32 %v244, %v245
        %v247 = vmax.f32 %v246, 0.0
        %v248 = vmin.f32 %v230, %v237
        %v249 = vmax.f32 %v226, %v233
        %v250 = vsub.f32 %v248, %v249
        %v251 = vmax.f32 %v250, 0.0
        %v252 = vmul.f32 %v247, %v251
        %v253 = vadd.f32 %v240, %v243
        %v254 = vsub.f32 %v253, %v252
        %v255 = vadd.f32 %v252, 1.0
        %v256 = vadd.f32 %v254, 1.0
        %v257 = vrcp.pop %v256
        %v258 = vmul.f32 %v255, %v257
        %v259 = vlog2.pop %v258
        %v260 = vmul.f32 %v259, 0.6931472
        %v261 = vsub.f32 0.0, %v260
        %s262 = sadd.s32 %s26, %s27
        %s263 = smul.u32 %s262, 1024
        %v264 = vlaneseq
        %v265 = vshrl.u32 %v264, 7
        %v266 = vlaneseq
        %v267 = vand.u32 %v266, 127
        %v268 = vmul.u32 %v265, 128
        %v269 = vstv %s263
        %v270 = vadd.s32 %v269, %v268
        %v271 = vadd.s32 %v270, %v267
        %vm272 = vcmp.lt.s32.totalorder %v271, 8
        %v273 = vsel %vm272, %v261, 0.0
        %v274 = vld [vmem:[%s216] sm:$0x1]
        %v275 = vrot.slane %v273, 4
        %v276 = vadd.f32 %v273, %v275
        %v277 = vrot.slane %v276, 2
        %v278 = vadd.f32 %v276, %v277
        %v279 = vrot.slane %v278, 1
        %v280 = vadd.f32 %v278, %v279
        %v281 = vadd.f32 %v274, %v280
        %282 = vst [vmem:[%s216] sm:$0x1] %v281
        %s283 = sand.u32 %s98, 1
        %s284 = scalar_lea.sflag [#allocation4], %s283
        %s285 = sand.u32 %s98, 1
        %s286 = scalar_lea.vmem [#allocation7], %s285
        // Predicated region
        $region41: #{tpu_custom_call.1} parent=27 // pred_check
          %p287 = pneg %p108
        $region42: #{tpu_custom_call.1} parent=27 // pred_check_branch
          %289 = sbr.rel (%p287) target = $region44
        $region43: #{tpu_custom_call.1} parent=27 // pred_region
          %s291 = ssub.s32 16, 16
          %292 = vsyncadd %s284, %s291
          %s293 = smul.addr %s26, 16
          %s294 = scalar_lea.hbm %s2, %s293
          %s296 = sshll.u32 %s286, 4
          %s297 = int_to_ptr.vmem [resolvable:$true] %s296
          %299 = dma.vmem_to_hbm [thread:$0]  %s297, 16, %s294, %s284
        $region44: #{tpu_custom_call.1} parent=27 // pred_fallthru
          _
      $region28: #{tpu_custom_call.1} parent=5 // pred_fallthru
        _
      %p300 = scmp.le.s32.totalorder 2, %s17
      // Predicated region
      $region45: #{tpu_custom_call.1} parent=5 // pred_check
        %p301 = pneg %p300
      $region46: #{tpu_custom_call.1} parent=5 // pred_check_branch
        %303 = sbr.rel (%p301) target = $region48
      $region47: #{tpu_custom_call.1} parent=5 // pred_region
        %s304 = ssub.s32 %s17, 2
        // Predicated region
        $region49: #{tpu_custom_call.1} parent=47 // pred_check
          %p305 = pneg %p114
        $region50: #{tpu_custom_call.1} parent=47 // pred_check_branch
          %307 = sbr.rel (%p305) target = $region52
        $region51: #{tpu_custom_call.1} parent=47 // pred_region
          %s308 = sand.u32 %s99, 1
          %s309 = scalar_lea.sflag [#allocation4], %s308
          %s310 = sand.u32 %s99, 1
          %s311 = scalar_lea.vmem [#allocation7], %s310
          %312 = dma.done %s309, 16
        $region52: #{tpu_custom_call.1} parent=47 // pred_fallthru
          _
      $region48: #{tpu_custom_call.1} parent=5 // pred_fallthru
        _
    $region6: #{tpu_custom_call.1} parent=1 // loop_footer
      %s21 = sadd.s32 1, %s17
    $region7: #{tpu_custom_call.1} parent=1 // loop_footer_branch
      %16 = sbr.rel target = $region3
    $region8: #{tpu_custom_call.1} parent=1 // loop_exit
      _
    %313 = vsyncpa [#allocation3], 1
    %s314 = scalar_lea.sflag [#allocation3], 1
    %315 = vsyncpa %s314, 1
    %316 = vsyncpa [#allocation6], 1
    %s317 = scalar_lea.sflag [#allocation6], 1
    %318 = vsyncpa %s317, 1
    %319 = vsyncpa [#allocation4], 1
    %s320 = scalar_lea.sflag [#allocation4], 1
    %321 = vsyncpa %s320, 1

</llo_original>
